<compile_context>
chip_gen: v5e
topology: v5e:2x2
jax: 0.10.0
libtpu: 0.0.40
codegen_flags: <defaults>
</compile_context>

<pallas_src>
from functools import lru_cache, partial

import jax
import jax.numpy as jnp
from jax.experimental import pallas as pl
from jax.experimental.pallas import tpu as pltpu


# --------------------------------------------------------------------------- #
# Hardware queries (trace-time, cached, with conservative fallbacks)
# --------------------------------------------------------------------------- #
@lru_cache(maxsize=None)
def _vmem_capacity_bytes() -> int:
    try:
        v = getattr(pltpu.get_tpu_info(), "vmem_capacity_bytes", None)
        if isinstance(v, int) and v > 0:
            return v
    except Exception:
        pass
    return 64 << 20  # conservative default (v7x per-TensorCore VMEM)


@lru_cache(maxsize=None)
def _num_tensorcores() -> int:
    try:
        info = pltpu.get_tpu_info()
        for attr in ("num_cores", "tensorcore_count", "num_tensorcores",
                     "core_count", "cores_per_chip"):
            v = getattr(info, attr, None)
            if isinstance(v, int) and v > 0:
                return v
    except Exception:
        pass
    return 1  # if unknown, never fire the 2-core split heuristic


# --------------------------------------------------------------------------- #
# Helpers
# --------------------------------------------------------------------------- #
def _round_up(n: int, m: int) -> int:
    return ((n + m - 1) // m) * m


def _largest_tile(extent: int, unit: int, target: int) -> int:
    """Largest multiple of `unit` that divides `extent` and is <= target."""
    q = extent // unit
    best = 1
    for r in range(1, q + 1):
        if q % r == 0 and r * unit <= target:
            best = r
    return best * unit


def _footprint(tm: int, tn: int, tk: int, cbytes: int, obytes: int) -> int:
    """Double-buffered x/W/out/bias tiles + f32 accumulator, in bytes."""
    return (2 * tm * tk * cbytes + 2 * tk * tn * cbytes
            + 2 * tm * tn * obytes + 2 * tn * 4 + tm * tn * 4)


def _pick_tm(Mp: int, sub: int, tn: int, tk: int,
             cbytes: int, obytes: int, budget: int) -> int:
    """Largest multiple of `sub` dividing Mp whose tile footprint fits VMEM."""
    q = Mp // sub
    for r in range(q, 0, -1):
        if q % r != 0:
            continue
        tm = r * sub
        if _footprint(tm, tn, tk, cbytes, obytes) <= budget:
            return tm
    return sub


# --------------------------------------------------------------------------- #
# Kernels
# --------------------------------------------------------------------------- #
def _dense_kernel_acc(x_ref, w_ref, b_ref, o_ref, acc_ref):
    """Multi-k-step grid: out[i, j] = sum_k x[i, k] @ W[k, j] + b[j]."""
    k = pl.program_id(2)

    @pl.when(k == 0)
    def _():
        acc_ref[...] = jnp.zeros_like(acc_ref)

    acc_ref[...] += jnp.dot(
        x_ref[...], w_ref[...], preferred_element_type=jnp.float32
    )

    @pl.when(k == pl.num_programs(2) - 1)
    def _():
        o_ref[...] = (acc_ref[...] + b_ref[...]).astype(o_ref.dtype)


def _dense_kernel_single(x_ref, w_ref, b_ref, o_ref):
    """Single-k-step fast path: no accumulator scratch, no pl.when phases."""
    o_ref[...] = (
        jnp.dot(x_ref[...], w_ref[...], preferred_element_type=jnp.float32)
        + b_ref[...]
    ).astype(o_ref.dtype)


# --------------------------------------------------------------------------- #
# Parameter preparation (done ONCE, outside the per-call jit)
# --------------------------------------------------------------------------- #
def prepare_dense_params(W, bias, compute_dtype=jnp.bfloat16):
    """Pad W/bias to 128-multiples and cast W to the MXU feed dtype once."""
    K, N = W.shape
    Kp, Np = _round_up(K, 128), _round_up(N, 128)
    if compute_dtype is not None:
        W = W.astype(compute_dtype)
    if (Kp, Np) != (K, N):
        W = jnp.pad(W, ((0, Kp - K), (0, Np - N)))
    b = bias.astype(jnp.float32)
    if Np != N:
        b = jnp.pad(b, (0, Np - N))
    return W, b.reshape(1, Np)


# --------------------------------------------------------------------------- #
# Forward (per-call): out = x @ W + bias
# --------------------------------------------------------------------------- #
@partial(jax.jit, static_argnames=("n_out", "tn_target", "tk_target"))
def dense_forward(x, W_pad, bias_pad, *, n_out, tn_target=512, tk_target=512):
    """x: (M, K); W_pad: (Kp, Np) pre-padded/pre-cast; bias_pad: (1, Np) f32."""
    M, K = x.shape
    Kp, Np = W_pad.shape
    assert K <= Kp and n_out <= Np
    out_dtype = x.dtype
    cdt = W_pad.dtype
    if x.dtype != cdt:
        x = x.astype(cdt)

    cbytes = jnp.dtype(cdt).itemsize
    obytes = jnp.dtype(out_dtype).itemsize

    # Sub-32-bit MXU feeds pack 2 rows per sublane: round M to 16, else 8.
    sub = 16 if cbytes < 4 else 8
    Mp = _round_up(M, sub)
    if (Mp, Kp) != (M, K):
        x = jnp.pad(x, ((0, Mp - M), (0, Kp - K)))

    cap = _vmem_capacity_bytes()
    budget = int(cap * 0.7)

    # Tight tiles: largest 128-multiples dividing the (already tight) pads.
    tn = _largest_tile(Np, 128, tn_target)
    tk = _largest_tile(Kp, 128, tk_target)
    # Grow tm toward full Mp while double-buffered tiles + acc fit VMEM.
    tm = _pick_tm(Mp, sub, tn, tk, cbytes, obytes, budget)

    # 2-TensorCore chips: if the parallel grid would be a single tile, split N
    # (already 128-aligned) so the second core gets work. Never fires on 1-TC.
    if (_num_tensorcores() >= 2 and (Mp // tm) * (Np // tn) < 2
            and tn == Np and Np % 256 == 0):
        tn = Np // 2

    gm, gn, gk = Mp // tm, Np // tn, Kp // tk
    assert Mp % tm == 0 and Np % tn == 0 and Kp % tk == 0

    cost = pl.CostEstimate(
        flops=2 * M * n_out * K,
        transcendentals=0,
        bytes_accessed=(Mp * Kp * cbytes + Kp * Np * cbytes
                        + Mp * Np * obytes + Np * 4),
    )
    sem = ("parallel", "parallel") + (("arbitrary",) if gk > 1 else ())
    cparams = pltpu.CompilerParams(
        dimension_semantics=sem,
        vmem_limit_bytes=int(cap * 0.8),
    )

    if gk == 1:
        out_padded = pl.pallas_call(
            _dense_kernel_single,
            out_shape=jax.ShapeDtypeStruct((Mp, Np), out_dtype),
            grid_spec=pltpu.PrefetchScalarGridSpec(
                num_scalar_prefetch=0,
                grid=(gm, gn),
                in_specs=[
                    pl.BlockSpec((tm, tk), lambda i, j: (i, 0)),   # x tile
                    pl.BlockSpec((tk, tn), lambda i, j: (0, j)),   # W tile
                    pl.BlockSpec((1, tn), lambda i, j: (0, j)),    # bias row
                ],
                out_specs=pl.BlockSpec((tm, tn), lambda i, j: (i, j)),
            ),
            compiler_params=cparams,
            cost_estimate=cost,
        )(x, W_pad, bias_pad)
    else:
        out_padded = pl.pallas_call(
            _dense_kernel_acc,
            out_shape=jax.ShapeDtypeStruct((Mp, Np), out_dtype),
            grid_spec=pltpu.PrefetchScalarGridSpec(
                num_scalar_prefetch=0,
                grid=(gm, gn, gk),
                in_specs=[
                    pl.BlockSpec((tm, tk), lambda i, j, k: (i, k)),  # x tile
                    pl.BlockSpec((tk, tn), lambda i, j, k: (k, j)),  # W tile
                    pl.BlockSpec((1, tn), lambda i, j, k: (0, j)),   # bias row
                ],
                out_specs=pl.BlockSpec((tm, tn), lambda i, j, k: (i, j)),
                scratch_shapes=[pltpu.VMEM((tm, tn), jnp.float32)],
            ),
            compiler_params=cparams,
            cost_estimate=cost,
        )(x, W_pad, bias_pad)

    if (Mp, Np) != (M, n_out):
        out_padded = out_padded[:M, :n_out]
    return out_padded


# --------------------------------------------------------------------------- #
# Module-level wrapper matching the PyTorch DenseLayer spec (forward only)
# --------------------------------------------------------------------------- #
class DenseLayer:
    """out = x @ W + bias, with W pre-padded/pre-cast once at construction."""

    def __init__(self, input_size, output_size, *, key=None,
                 compute_dtype=jnp.bfloat16):
        key = jax.random.PRNGKey(0) if key is None else key
        k_w, k_b = jax.random.split(key)
        self.W = jax.random.normal(k_w, (input_size, output_size), jnp.float32)
        self.bias = jax.random.normal(k_b, (output_size,), jnp.float32)
        self.output_size = output_size
        # One-time pad/cast: avoids re-writing a padded/cast W to HBM per call.
        self._W_pad, self._bias_pad = prepare_dense_params(
            self.W, self.bias, compute_dtype=compute_dtype)

    def forward(self, x, mode="dense"):
        return dense_forward(x, self._W_pad, self._bias_pad,
                             n_out=self.output_size)

    __call__ = forward

    # TODO(synk): DenseLayer.step / set_all_zero / write are training-loop and
    # file-I/O utilities, not part of the forward pass -> not kernelized.


if __name__ == "__main__":
    key = jax.random.PRNGKey(0)
    k1, k2, k3, k4 = jax.random.split(key, 4)

    # --- spec-scale shapes, exact f32 path (single-k fast-path kernel) ------
    batch, input_size, output_size = 8, 32, 16
    layer = DenseLayer(input_size, output_size, key=k1, compute_dtype=None)
    x = jax.random.normal(k2, (batch, input_size), dtype=jnp.float32)
    out = layer(x)
    jax.block_until_ready(out)
    ref = x @ layer.W + layer.bias
    assert out.shape == (batch, output_size)
    assert jnp.allclose(out, ref, atol=1e-5, rtol=1e-5)

    # --- unaligned shapes: tight 128-padding of K/N, multi-k accumulator ----
    b2, i2, o2 = 48, 520, 200
    layer2 = DenseLayer(i2, o2, key=k3, compute_dtype=None)
    x2 = jax.random.normal(k4, (b2, i2), dtype=jnp.float32)
    out2 = layer2(x2)
    jax.block_until_ready(out2)
    ref2 = x2 @ layer2.W + layer2.bias
    assert out2.shape == (b2, o2)
    assert jnp.allclose(out2, ref2, atol=1e-4, rtol=1e-4)

    # --- default bf16 MXU feed (W stored bf16 once), f32 accumulation -------
    layer3 = DenseLayer(i2, o2, key=k3)            # compute_dtype=bf16 default
    out3 = layer3(x2)
    jax.block_until_ready(out3)
    assert out3.shape == (b2, o2)
    assert jnp.allclose(out3, ref2, atol=0.5, rtol=5e-2)

    print("KERNEL_OK")
</pallas_src>

<mosaic_0001>
module attributes {stable_mosaic.version = 11 : i64} {
  func.func @_dense_kernel_single(%arg0: i32, %arg1: i32, %arg2: memref<8x128xf32, #tpu.memory_space<vmem>>, %arg3: memref<128x128xf32, #tpu.memory_space<vmem>>, %arg4: memref<1x128xf32, #tpu.memory_space<vmem>>, %arg5: memref<8x128xf32, #tpu.memory_space<vmem>>) attributes {dimension_semantics = [#tpu.dimension_semantics<parallel>, #tpu.dimension_semantics<parallel>], iteration_bounds = array<i64: 1, 1>, scalar_prefetch = 0 : i64, scratch_operands = 0 : i64, tpu.core_type = #tpu.core_type<tc>, window_params = [{transform_indices = @transform_0, window_bounds = array<i64: 8, 128>}, {transform_indices = @transform_1, window_bounds = array<i64: 128, 128>}, {transform_indices = @transform_2, window_bounds = array<i64: 1, 128>}, {transform_indices = @transform_3, window_bounds = array<i64: 8, 128>}]} {
    %c0 = arith.constant 0 : index
    %c0_0 = arith.constant 0 : index
    %0 = vector.load %arg2[%c0, %c0_0] : memref<8x128xf32, #tpu.memory_space<vmem>>, vector<8x128xf32>
    %c0_1 = arith.constant 0 : index
    %c0_2 = arith.constant 0 : index
    %1 = vector.load %arg3[%c0_1, %c0_2] : memref<128x128xf32, #tpu.memory_space<vmem>>, vector<128x128xf32>
    %cst = arith.constant dense<0.000000e+00> : vector<8x128xf32>
    %2 = tpu.matmul %0, %1, %cst {dimension_numbers = #tpu.dot_dimension_numbers<[1], [0], [0], [1], [0, 0, 1, 1], [], []>} : vector<8x128xf32>, vector<128x128xf32>, vector<8x128xf32> -> vector<8x128xf32>
    %c0_3 = arith.constant 0 : index
    %c0_4 = arith.constant 0 : index
    %3 = vector.load %arg4[%c0_3, %c0_4] : memref<1x128xf32, #tpu.memory_space<vmem>>, vector<1x128xf32>
    %4 = vector.broadcast %3 : vector<1x128xf32> to vector<8x128xf32>
    %5 = arith.addf %2, %4 : vector<8x128xf32>
    %c0_5 = arith.constant 0 : index
    %c0_6 = arith.constant 0 : index
    %6 = vector.load %arg5[%c0_5, %c0_6] : memref<8x128xf32, #tpu.memory_space<vmem>>, vector<8x128xf32>
    tpu.vector_store %arg5[%c0_5, %c0_6], %5 {strides = array<i32>} : memref<8x128xf32, #tpu.memory_space<vmem>>, vector<8x128xf32>,
    return
  }
  func.func @transform_0(%arg0: i32, %arg1: i32) -> (i32, i32) {
    %c0_i32 = arith.constant 0 : i32
    %c0_i32_0 = arith.constant 0 : i32
    return %arg0, %c0_i32 : i32, i32
  }
  func.func @transform_1(%arg0: i32, %arg1: i32) -> (i32, i32) {
    %c0_i32 = arith.constant 0 : i32
    %c0_i32_0 = arith.constant 0 : i32
    return %c0_i32, %arg1 : i32, i32
  }
  func.func @transform_2(%arg0: i32, %arg1: i32) -> (i32, i32) {
    %c0_i32 = arith.constant 0 : i32
    %c0_i32_0 = arith.constant 0 : i32
    return %c0_i32, %arg1 : i32, i32
  }
  func.func @transform_3(%arg0: i32, %arg1: i32) -> (i32, i32) {
    %c0_i32 = arith.constant 0 : i32
    return %arg0, %arg1 : i32, i32
  }
}

</mosaic_0001>

<llo_original>
// kernel: dense_forward.1
$region0: #{dense_forward.1}
  #allocation0 [shape = 'u32[]', space=smem, size = 0x4, offset = 0x4, fixed_abs, tag = 'smem constant byte address 0x4 - core index']
  #allocation1 [shape = 'u32[72,128]{1,0:T(1,128)}', space=vmem, size = 0x9000, scoped, tag = 'internal scratch']
  %s0 = inlined_call_operand.vmem [shape: f32[8,128], index: 0, kind: input, shape index: {}]
  %s1 = inlined_call_operand.hbm [shape: f32[128,128], index: 1, kind: input, shape index: {}]
  %s2 = inlined_call_operand.vmem [shape: f32[1,128], index: 2, kind: input, shape index: {}]
  %s3 = inlined_call_operand.hbm [shape: f32[8,128], index: 3, kind: output, shape index: {}]
  %s4 = sld [smem:[#allocation0]]
  $region26: #{dense_forward.1} parent=0
    _
  %s6 = ssub.s32 1, %s4
  %s7 = scalar_select 0, %s6, %s4
  $region1: #{dense_forward.1} parent=0
    #allocation2 [shape = 'u8[65536]{0}', space=vmem, size = 0x10000, scoped, tag = 'input window, operand 1, single buffered']
    #allocation3 [shape = 's32[1]{0}', space=sflag, size = 0x4, scoped, tag = 'scoped memory for dense_forward.1']
    #allocation4 [shape = 's32[1]{0}', space=sflag, size = 0x4, scoped, tag = 'scoped memory for dense_forward.1']
    #allocation5 [shape = 'u8[4096]{0}', space=vmem, size = 0x1000, scoped, tag = 'output window, operand 0, single buffered']
    %8 = vsyncpa [#allocation3], 0
    %9 = vsyncpa [#allocation4], 0
    // Predicated region
    $region2: #{dense_forward.1} parent=1 // pred_check
      _
    $region3: #{dense_forward.1} parent=1 // pred_check_branch
      %11 = sbr.rel (0) target = $region5
    $region4: #{dense_forward.1} parent=1 // pred_region
      _
    $region5: #{dense_forward.1} parent=1 // pred_fallthru
      _
    // Predicated region
    $region6: #{dense_forward.1} parent=1 // pred_check
      _
    $region7: #{dense_forward.1} parent=1 // pred_check_branch
      %13 = sbr.rel (0) target = $region9
    $region8: #{dense_forward.1} parent=1 // pred_region
      %15 = vsyncadd [#allocation3], 0
      %s16 = sshll.u32 %s1, 4
      %s17 = int_to_ptr.hbm [resolvable:$true] %s16
      %s18 = sshll.u32 [#allocation2], 4
      %s19 = int_to_ptr.vmem [resolvable:$true] %s18
      %24 = dma.hbm_to_vmem [thread:$0]  %s17, 2048, %s19, [#allocation3], 128, 128, 8
    $region9: #{dense_forward.1} parent=1 // pred_fallthru
      _
    // Predicated region
    $region10: #{dense_forward.1} parent=1 // pred_check
      _
    $region11: #{dense_forward.1} parent=1 // pred_check_branch
      %26 = sbr.rel (0) target = $region13
    $region12: #{dense_forward.1} parent=1 // pred_region
      _
    $region13: #{dense_forward.1} parent=1 // pred_fallthru
      _
    // Predicated region
    $region14: #{dense_forward.1} parent=1 // pred_check
      _
    $region15: #{dense_forward.1} parent=1 // pred_check_branch
      %28 = sbr.rel (0) target = $region17
    $region16: #{dense_forward.1} parent=1 // pred_region
      %30 = dma.done [#allocation3], 2048
    $region17: #{dense_forward.1} parent=1 // pred_fallthru
      _
    %v31 = vld [vmem:[%s0] sm:$0xff]
    %v32 = vld [vmem:[#allocation2] sm:$0xff]
    %v33 = vld [vmem:[#allocation2 + $0x8] sm:$0xff]
    %v34 = vld [vmem:[#allocation2 + $0x10] sm:$0xff]
    %v35 = vld [vmem:[#allocation2 + $0x18] sm:$0xff]
    %v36 = vld [vmem:[#allocation2 + $0x20] sm:$0xff]
    %v37 = vld [vmem:[#allocation2 + $0x28] sm:$0xff]
    %v38 = vld [vmem:[#allocation2 + $0x30] sm:$0xff]
    %v39 = vld [vmem:[#allocation2 + $0x38] sm:$0xff]
    %v40 = vld [vmem:[#allocation2 + $0x40] sm:$0xff]
    %v41 = vld [vmem:[#allocation2 + $0x48] sm:$0xff]
    %v42 = vld [vmem:[#allocation2 + $0x50] sm:$0xff]
    %v43 = vld [vmem:[#allocation2 + $0x58] sm:$0xff]
    %v44 = vld [vmem:[#allocation2 + $0x60] sm:$0xff]
    %v45 = vld [vmem:[#allocation2 + $0x68] sm:$0xff]
    %v46 = vld [vmem:[#allocation2 + $0x70] sm:$0xff]
    %v47 = vld [vmem:[#allocation2 + $0x78] sm:$0xff]
    %v48 = vld [vmem:[%s2] sm:$0x1]
    %v50 = vperm.slane %v48, 0
    %52 = vmatpush.msra.mxu0 %v47
    %53 = vmatpush.msra.mxu0 %v46
    %54 = vmatpush.msra.mxu0 %v45
    %55 = vmatpush.msra.mxu0 %v44
    %56 = vmatpush.msra.mxu0 %v43
    %57 = vmatpush.msra.mxu0 %v42
    %58 = vmatpush.msra.mxu0 %v41
    %59 = vmatpush.msra.mxu0 %v40
    %60 = vmatpush.msra.mxu0 %v39
    %61 = vmatpush.msra.mxu0 %v38
    %62 = vmatpush.msra.mxu0 %v37
    %63 = vmatpush.msra.mxu0 %v36
    %64 = vmatpush.msra.mxu0 %v35
    %65 = vmatpush.msra.mxu0 %v34
    %66 = vmatpush.msra.mxu0 %v33
    %67 = vmatpush.msra.mxu0 %v32
    %68 = vmatmul.f32.gmra.mxu0 %v31
    %v69 = vpop.f32.mrf.mxu0
    %v70 = vadd.f32 %v50, %v69
    %71 = vdwg.mxu0
    %72 = vst [vmem:[#allocation5] sm:$0xff] %v70
    // Predicated region
    $region18: #{dense_forward.1} parent=1 // pred_check
      _
    $region19: #{dense_forward.1} parent=1 // pred_check_branch
      %74 = sbr.rel (0) target = $region21
    $region20: #{dense_forward.1} parent=1 // pred_region
      %76 = vsyncadd [#allocation4], 0
      %s78 = sshll.u32 [#allocation5], 4
      %s79 = int_to_ptr.vmem [resolvable:$true] %s78
      %s80 = sshll.u32 %s3, 4
      %s81 = int_to_ptr.hbm [resolvable:$true] %s80
      %83 = dma.vmem_to_hbm [thread:$0]  %s79, 128, %s81, [#allocation4]
    $region21: #{dense_forward.1} parent=1 // pred_fallthru
      _
    // Predicated region
    $region22: #{dense_forward.1} parent=1 // pred_check
      _
    $region23: #{dense_forward.1} parent=1 // pred_check_branch
      %85 = sbr.rel (0) target = $region25
    $region24: #{dense_forward.1} parent=1 // pred_region
      %87 = dma.done [#allocation4], 128
    $region25: #{dense_forward.1} parent=1 // pred_fallthru
      _
    %88 = vsyncpa [#allocation3], 1
    %89 = vsyncpa [#allocation4], 1

</llo_original>
